<compile_context>
chip_gen: v7x
topology: tpu7x:2x2x1
jax: 0.10.0
libtpu: 0.0.40
codegen_flags: <defaults>
</compile_context>

<pallas_src>
import functools

import jax
import jax.numpy as jnp
from jax.experimental import pallas as pl
from jax.experimental.pallas import tpu as pltpu

_NEG_LARGE = -1e30  # bias for padded logit columns (never wins argmax)


def dann_forward_kernel(x_ref, w1_ref, b1_ref, w2_ref, b2_ref,
                        pred_ref, idx_ref, acc_ref):
    k = pl.program_id(1)

    @pl.when(k == 0)
    def _():
        acc_ref[...] = jnp.zeros_like(acc_ref)

    # Backbone partial sum: acc += x_tile @ W1_tile   (bf16 MXU, f32 accumulate)
    acc_ref[...] += jnp.dot(x_ref[...], w1_ref[...],
                            preferred_element_type=jnp.float32)

    @pl.when(k == pl.num_programs(1) - 1)
    def _():
        # Finalize backbone: bias + ReLU applied once (not per K step).
        feat = jnp.maximum(acc_ref[...] + b1_ref[...], 0.0)

        # Classifier: logits = feat @ W2 + b2 (padded cols get -1e30 via b2).
        logits = jnp.dot(feat.astype(w2_ref.dtype), w2_ref[...],
                         preferred_element_type=jnp.float32) + b2_ref[...]
        pred_ref[...] = logits

        # predicted = first maximal index (torch.max(dim=1) semantics).
        c_pad = logits.shape[-1]
        max_val = jnp.max(logits, axis=-1, keepdims=True)
        ids = jax.lax.broadcasted_iota(jnp.int32, logits.shape, 1)
        masked = jnp.where(logits == max_val, ids, jnp.int32(c_pad))
        idx = jnp.min(masked, axis=-1, keepdims=True)
        # Lane-dense int32 slab: every lane carries the argmax; wrapper reads lane 0.
        idx_ref[...] = jnp.broadcast_to(idx, idx_ref.shape)


def _round_up(v, m):
    return ((v + m - 1) // m) * m


@functools.partial(jax.jit, static_argnames=("tb", "tk"))
def method_forward(x_nchw, params, *, tb=128, tk=512):
    """Pallas equivalent of Method.forward: returns (predicted, prediction)."""
    w1, b1, w2, b2 = params
    B = x_nchw.shape[0]
    in_dim = w1.shape[0]
    feat_size = w1.shape[1]
    num_classes = w2.shape[1]

    # Padded / tiled sizes (lane-dim multiples of 128, batch tile multiple of 8).
    f_pad = _round_up(feat_size, 128)
    c_pad = _round_up(num_classes, 128)
    tb_ = min(tb, _round_up(B, 8))
    b_pad = _round_up(B, tb_)
    k_pad = _round_up(in_dim, 128)
    tk_ = min(tk, k_pad)
    k_pad = _round_up(k_pad, tk_)

    # Flatten NCHW row-major (== torch.flatten(x, 1)); stream x/weights as bf16.
    x_flat = x_nchw.reshape(B, in_dim)
    x_p = jnp.zeros((b_pad, k_pad), jnp.bfloat16)
    x_p = x_p.at[:B, :in_dim].set(x_flat.astype(jnp.bfloat16))

    w1_p = jnp.zeros((k_pad, f_pad), jnp.bfloat16)
    w1_p = w1_p.at[:in_dim, :feat_size].set(w1.astype(jnp.bfloat16))
    b1_p = jnp.zeros((1, f_pad), jnp.float32)
    b1_p = b1_p.at[0, :feat_size].set(b1.astype(jnp.float32))

    w2_p = jnp.zeros((f_pad, c_pad), jnp.bfloat16)
    w2_p = w2_p.at[:feat_size, :num_classes].set(w2.astype(jnp.bfloat16))
    b2_p = jnp.full((1, c_pad), _NEG_LARGE, jnp.float32)
    b2_p = b2_p.at[0, :num_classes].set(b2.astype(jnp.float32))

    grid = (b_pad // tb_, k_pad // tk_)

    flops = 2 * b_pad * k_pad * f_pad + 2 * b_pad * f_pad * c_pad
    bytes_accessed = (x_p.size * 2 + w1_p.size * 2 + w2_p.size * 2
                      + b1_p.size * 4 + b2_p.size * 4
                      + b_pad * c_pad * 4 + b_pad * 128 * 4)

    pred_p, idx_p = pl.pallas_call(
        dann_forward_kernel,
        out_shape=(
            jax.ShapeDtypeStruct((b_pad, c_pad), jnp.float32),
            jax.ShapeDtypeStruct((b_pad, 128), jnp.int32),
        ),
        grid_spec=pltpu.PrefetchScalarGridSpec(
            num_scalar_prefetch=0,
            grid=grid,
            in_specs=[
                pl.BlockSpec((tb_, tk_), lambda i, k: (i, k)),        # x: batch+K tiled
                pl.BlockSpec((tk_, f_pad), lambda i, k: (k, 0)),      # W1: streamed over K
                pl.BlockSpec((1, f_pad), lambda i, k: (0, 0)),        # b1: resident
                pl.BlockSpec((f_pad, c_pad), lambda i, k: (0, 0)),    # W2: resident
                pl.BlockSpec((1, c_pad), lambda i, k: (0, 0)),        # b2: resident
            ],
            out_specs=(
                pl.BlockSpec((tb_, c_pad), lambda i, k: (i, 0)),      # logits (lane-dense)
                pl.BlockSpec((tb_, 128), lambda i, k: (i, 0)),        # argmax slab
            ),
            scratch_shapes=[pltpu.VMEM((tb_, f_pad), jnp.float32)],
        ),
        compiler_params=pltpu.CompilerParams(
            dimension_semantics=("parallel", "arbitrary"),
            vmem_limit_bytes=48 * 1024 * 1024,
        ),
        cost_estimate=pl.CostEstimate(
            flops=flops, transcendentals=0, bytes_accessed=bytes_accessed),
    )(x_p, w1_p, b1_p, w2_p, b2_p)

    prediction = pred_p[:B, :num_classes]
    predicted = idx_p[:B, 0]
    return predicted, prediction


def init_params(key, in_dim, feat_size, num_classes):
    k1, k2, k3, k4 = jax.random.split(key, 4)
    w1 = jax.random.normal(k1, (in_dim, feat_size), jnp.float32) * 0.02
    b1 = jax.random.normal(k2, (feat_size,), jnp.float32) * 0.01
    w2 = jax.random.normal(k3, (feat_size, num_classes), jnp.float32) * 0.02
    b2 = jax.random.normal(k4, (num_classes,), jnp.float32) * 0.01
    return w1, b1, w2, b2


if __name__ == "__main__":
    # Small shapes consistent with the module's forward contract.
    B, C, H, W = 2, 4, 16, 16
    feat_size = 32        # network.out_features (synthetic)
    num_classes = 16      # small stand-in for num_classes

    key = jax.random.PRNGKey(0)
    kx, kp = jax.random.split(key)
    x = jax.random.normal(kx, (B, C, H, W), jnp.float32)
    params = init_params(kp, C * H * W, feat_size, num_classes)

    predicted, prediction = method_forward(x, params)
    jax.block_until_ready((predicted, prediction))

    # Sanity: shapes/dtypes match PyTorch semantics.
    assert prediction.shape == (B, num_classes) and prediction.dtype == jnp.float32
    assert predicted.shape == (B,) and predicted.dtype == jnp.int32
    # Kernel-internal consistency: predicted is the argmax of the returned logits.
    assert bool(jnp.all(predicted == jnp.argmax(prediction, axis=1)))

    # Cross-check logits against a pure-JAX reference using the same bf16 inputs.
    w1, b1, w2, b2 = params
    x_ref = x.reshape(B, -1).astype(jnp.bfloat16)
    feat_ref = jnp.maximum(
        jnp.dot(x_ref, w1.astype(jnp.bfloat16),
                preferred_element_type=jnp.float32) + b1, 0.0)
    logits_ref = jnp.dot(feat_ref.astype(jnp.bfloat16), w2.astype(jnp.bfloat16),
                         preferred_element_type=jnp.float32) + b2
    assert jnp.allclose(prediction, logits_ref, rtol=2e-2, atol=2e-2)

    print("KERNEL_OK")
</pallas_src>

<mosaic_0001>
module attributes {stable_mosaic.version = 11 : i64} {
  func.func @dann_forward_kernel(%arg0: i32, %arg1: i32, %arg2: memref<8x512xbf16, #tpu.memory_space<vmem>>, %arg3: memref<512x128xbf16, #tpu.memory_space<vmem>>, %arg4: memref<1x128xf32, #tpu.memory_space<vmem>>, %arg5: memref<128x128xbf16, #tpu.memory_space<vmem>>, %arg6: memref<1x128xf32, #tpu.memory_space<vmem>>, %arg7: memref<8x128xf32, #tpu.memory_space<vmem>>, %arg8: memref<8x128xi32, #tpu.memory_space<vmem>>, %arg9: memref<8x128xf32, #tpu.memory_space<vmem>>) attributes {dimension_semantics = [#tpu.dimension_semantics<parallel>, #tpu.dimension_semantics<arbitrary>], iteration_bounds = array<i64: 1, 2>, scalar_prefetch = 0 : i64, scratch_operands = 1 : i64, tpu.core_type = #tpu.core_type<tc>, window_params = [{transform_indices = @transform_0, window_bounds = array<i64: 8, 512>}, {transform_indices = @transform_1, window_bounds = array<i64: 512, 128>}, {pipeline_mode = #tpu.pipeline_mode<synchronous>, transform_indices = @transform_2, window_bounds = array<i64: 1, 128>}, {pipeline_mode = #tpu.pipeline_mode<synchronous>, transform_indices = @transform_3, window_bounds = array<i64: 128, 128>}, {pipeline_mode = #tpu.pipeline_mode<synchronous>, transform_indices = @transform_4, window_bounds = array<i64: 1, 128>}, {transform_indices = @transform_5, window_bounds = array<i64: 8, 128>}, {transform_indices = @transform_6, window_bounds = array<i64: 8, 128>}]} {
    %c0_i32 = arith.constant 0 : i32
    %0 = arith.cmpi eq, %arg1, %c0_i32 : i32
    %1 = arith.extui %0 : i1 to i32
    %c0_i32_0 = arith.constant 0 : i32
    %2 = arith.cmpi ne, %1, %c0_i32_0 : i32
    scf.if %2 {
      %cst_9 = arith.constant 0.000000e+00 : f32
      %12 = vector.broadcast %cst_9 : f32 to vector<8x128xf32>
      %c0_10 = arith.constant 0 : index
      %c0_11 = arith.constant 0 : index
      %13 = vector.load %arg9[%c0_10, %c0_11] : memref<8x128xf32, #tpu.memory_space<vmem>>, vector<8x128xf32>
      tpu.vector_store %arg9[%c0_10, %c0_11], %12 {strides = array<i32>} : memref<8x128xf32, #tpu.memory_space<vmem>>, vector<8x128xf32>,
    } else {
    }
    %c0 = arith.constant 0 : index
    %c0_1 = arith.constant 0 : index
    %3 = vector.load %arg9[%c0, %c0_1] : memref<8x128xf32, #tpu.memory_space<vmem>>, vector<8x128xf32>
    %c0_2 = arith.constant 0 : index
    %c0_3 = arith.constant 0 : index
    %4 = vector.load %arg2[%c0_2, %c0_3] : memref<8x512xbf16, #tpu.memory_space<vmem>>, vector<8x512xbf16>
    %c0_4 = arith.constant 0 : index
    %c0_5 = arith.constant 0 : index
    %5 = vector.load %arg3[%c0_4, %c0_5] : memref<512x128xbf16, #tpu.memory_space<vmem>>, vector<512x128xbf16>
    %cst = arith.constant dense<0.000000e+00> : vector<8x128xf32>
    %6 = tpu.matmul %4, %5, %cst {dimension_numbers = #tpu.dot_dimension_numbers<[1], [0], [0], [1], [0, 0, 1, 1], [], []>} : vector<8x512xbf16>, vector<512x128xbf16>, vector<8x128xf32> -> vector<8x128xf32>
    %7 = arith.addf %3, %6 : vector<8x128xf32>
    %c0_6 = arith.constant 0 : index
    %c0_7 = arith.constant 0 : index
    %8 = vector.load %arg9[%c0_6, %c0_7] : memref<8x128xf32, #tpu.memory_space<vmem>>, vector<8x128xf32>
    tpu.vector_store %arg9[%c0_6, %c0_7], %7 {strides = array<i32>} : memref<8x128xf32, #tpu.memory_space<vmem>>, vector<8x128xf32>,
    %c1_i32 = arith.constant 1 : i32
    %9 = arith.cmpi eq, %arg1, %c1_i32 : i32
    %10 = arith.extui %9 : i1 to i32
    %c0_i32_8 = arith.constant 0 : i32
    %11 = arith.cmpi ne, %10, %c0_i32_8 : i32
    scf.if %11 {
      %c0_9 = arith.constant 0 : index
      %c0_10 = arith.constant 0 : index
      %12 = vector.load %arg9[%c0_9, %c0_10] : memref<8x128xf32, #tpu.memory_space<vmem>>, vector<8x128xf32>
      %c0_11 = arith.constant 0 : index
      %c0_12 = arith.constant 0 : index
      %13 = vector.load %arg4[%c0_11, %c0_12] : memref<1x128xf32, #tpu.memory_space<vmem>>, vector<1x128xf32>
      %14 = vector.broadcast %13 : vector<1x128xf32> to vector<8x128xf32>
      %15 = arith.addf %12, %14 : vector<8x128xf32>
      %cst_13 = arith.constant 0.000000e+00 : f32
      %16 = vector.broadcast %cst_13 : f32 to vector<8x128xf32>
      %17 = arith.maximumf %15, %16 : vector<8x128xf32>
      %18 = arith.truncf %17 : vector<8x128xf32> to vector<8x128xbf16>
      %c0_14 = arith.constant 0 : index
      %c0_15 = arith.constant 0 : index
      %19 = vector.load %arg5[%c0_14, %c0_15] : memref<128x128xbf16, #tpu.memory_space<vmem>>, vector<128x128xbf16>
      %cst_16 = arith.constant dense<0.000000e+00> : vector<8x128xf32>
      %20 = tpu.matmul %18, %19, %cst_16 {dimension_numbers = #tpu.dot_dimension_numbers<[1], [0], [0], [1], [0, 0, 1, 1], [], []>} : vector<8x128xbf16>, vector<128x128xbf16>, vector<8x128xf32> -> vector<8x128xf32>
      %c0_17 = arith.constant 0 : index
      %c0_18 = arith.constant 0 : index
      %21 = vector.load %arg6[%c0_17, %c0_18] : memref<1x128xf32, #tpu.memory_space<vmem>>, vector<1x128xf32>
      %22 = vector.broadcast %21 : vector<1x128xf32> to vector<8x128xf32>
      %23 = arith.addf %20, %22 : vector<8x128xf32>
      %c0_19 = arith.constant 0 : index
      %c0_20 = arith.constant 0 : index
      %24 = vector.load %arg7[%c0_19, %c0_20] : memref<8x128xf32, #tpu.memory_space<vmem>>, vector<8x128xf32>
      tpu.vector_store %arg7[%c0_19, %c0_20], %23 {strides = array<i32>} : memref<8x128xf32, #tpu.memory_space<vmem>>, vector<8x128xf32>,
      %cst_21 = arith.constant dense<0xFF800000> : vector<8xf32>
      %25 = vector.multi_reduction <maximumf>, %23, %cst_21 [1] : vector<8x128xf32> to vector<8xf32>
      %26 = vector.shape_cast %25 : vector<8xf32> to vector<8x1xf32>
      %27 = tpu.iota {dimensions = array<i32: 1>} : vector<8x128xi32>
      %28 = vector.broadcast %26 : vector<8x1xf32> to vector<8x128xf32>
      %29 = arith.cmpf oeq, %23, %28 : vector<8x128xf32>
      %c128_i32 = arith.constant 128 : i32
      %30 = vector.broadcast %c128_i32 : i32 to vector<8x128xi32>
      %31 = arith.select %29, %27, %30 : vector<8x128xi1>, vector<8x128xi32>
      %cst_22 = arith.constant dense<2147483647> : vector<8xi32>
      %32 = vector.multi_reduction <minsi>, %31, %cst_22 [1] : vector<8x128xi32> to vector<8xi32>
      %33 = vector.shape_cast %32 : vector<8xi32> to vector<8x1xi32>
      %34 = vector.shape_cast %33 : vector<8x1xi32> to vector<8x1xi32>
      %35 = vector.broadcast %34 : vector<8x1xi32> to vector<8x128xi32>
      %c0_23 = arith.constant 0 : index
      %c0_24 = arith.constant 0 : index
      %36 = vector.load %arg8[%c0_23, %c0_24] : memref<8x128xi32, #tpu.memory_space<vmem>>, vector<8x128xi32>
      tpu.vector_store %arg8[%c0_23, %c0_24], %35 {strides = array<i32>} : memref<8x128xi32, #tpu.memory_space<vmem>>, vector<8x128xi32>,
    } else {
    }
    return
  }
  func.func @transform_0(%arg0: i32, %arg1: i32) -> (i32, i32) {
    %c0_i32 = arith.constant 0 : i32
    return %arg0, %arg1 : i32, i32
  }
  func.func @transform_1(%arg0: i32, %arg1: i32) -> (i32, i32) {
    %c0_i32 = arith.constant 0 : i32
    %c0_i32_0 = arith.constant 0 : i32
    return %arg1, %c0_i32 : i32, i32
  }
  func.func @transform_2(%arg0: i32, %arg1: i32) -> (i32, i32) {
    %c0_i32 = arith.constant 0 : i32
    %c0_i32_0 = arith.constant 0 : i32
    %c0_i32_1 = arith.constant 0 : i32
    return %c0_i32, %c0_i32_0 : i32, i32
  }
  func.func @transform_3(%arg0: i32, %arg1: i32) -> (i32, i32) {
    %c0_i32 = arith.constant 0 : i32
    %c0_i32_0 = arith.constant 0 : i32
    %c0_i32_1 = arith.constant 0 : i32
    return %c0_i32, %c0_i32_0 : i32, i32
  }
  func.func @transform_4(%arg0: i32, %arg1: i32) -> (i32, i32) {
    %c0_i32 = arith.constant 0 : i32
    %c0_i32_0 = arith.constant 0 : i32
    %c0_i32_1 = arith.constant 0 : i32
    return %c0_i32, %c0_i32_0 : i32, i32
  }
  func.func @transform_5(%arg0: i32, %arg1: i32) -> (i32, i32) {
    %c0_i32 = arith.constant 0 : i32
    %c0_i32_0 = arith.constant 0 : i32
    return %arg0, %c0_i32 : i32, i32
  }
  func.func @transform_6(%arg0: i32, %arg1: i32) -> (i32, i32) {
    %c0_i32 = arith.constant 0 : i32
    %c0_i32_0 = arith.constant 0 : i32
    return %arg0, %c0_i32 : i32, i32
  }
}

</mosaic_0001>

<llo_original>
// kernel: method_forward.1
$region0: #{method_forward.1}
  #allocation0 [shape = 'u32[]', space=smem, size = 0x4, offset = 0x4, fixed_abs, tag = 'smem constant byte address 0x4 - core index']
  #allocation1 [shape = 'u32[144,128]{1,0:T(1,128)}', space=vmem, size = 0x12000, scoped, tag = 'internal scratch']
  #allocation2 [shape = 'f32[8,128]{1,0:T(8,128)}', space=vmem, size = 0x1000, scoped, tag = 'scratch operand']
  %s0 = inlined_call_operand.vmem [shape: bf16[8,1024], index: 0, kind: input, shape index: {}]
  %s1 = inlined_call_operand.vmem [shape: bf16[1024,128], index: 1, kind: input, shape index: {}]
  %s2 = inlined_call_operand.vmem [shape: f32[1,128], index: 2, kind: input, shape index: {}]
  %s3 = inlined_call_operand.vmem [shape: bf16[128,128], index: 3, kind: input, shape index: {}]
  %s4 = inlined_call_operand.vmem [shape: f32[1,128], index: 4, kind: input, shape index: {}]
  %s5 = inlined_call_operand.vmem [shape: f32[8,128], index: 5, kind: output, shape index: {0}]
  %s6 = inlined_call_operand.vmem [shape: s32[8,128], index: 6, kind: output, shape index: {1}]
  %7 = xla_tuple %s5, %s6
  %s8 = sld [smem:[#allocation0]]
  $region69: #{method_forward.1} parent=0
    _
  %s10 = ssub.s32 1, %s8
  %s11 = scalar_select 0, %s10, %s8
  loop: start=0, step=1, limit=4
  $region2: #{method_forward.1} parent=0 // loop_pre_header
    _
  $region3: #{method_forward.1} parent=0 // loop_header
    %s13 = sphi 0, %s17
    %p14 = scmp.ge.s32.totalorder %s13, 4
    %s20 = sphi 0, %s32
    %s21 = sphi 0, %s28
    %s22 = sphi 0, %s20
    %s23 = sphi 0, %s21
    %s24 = sphi 0, %s22
    %s25 = sphi 0, %s23
    %s37 = sphi 0, %s39
    %s40 = sphi 0, %s37
    %s41 = sphi 0, %s40
    %s57 = sphi 0, %s41
    %s63 = sphi 0, %s65
    %s66 = sphi 0, %s63
    %s67 = sphi 0, %s66
    %s83 = sphi 0, %s67
    %s87 = sphi 0, %s87
    %s89 = sphi 0, %s87
    %s90 = sphi 0, %s89
    %s104 = sphi 0, %s90
    %s108 = sphi 0, %s108
    %s110 = sphi 0, %s108
    %s111 = sphi 0, %s110
    %s125 = sphi 0, %s111
    %s129 = sphi 0, %s129
    %s131 = sphi 0, %s129
    %s132 = sphi 0, %s131
    %s146 = sphi 0, %s132
    %s152 = sphi 0, %s154
    %s155 = sphi 0, %s152
    %s156 = sphi 0, %s155
    %s172 = sphi 0, %s156
    %s178 = sphi 0, %s180
    %s181 = sphi 0, %s178
    %s182 = sphi 0, %s181
    %s198 = sphi 0, %s182
  $region4: #{method_forward.1} parent=0 // loop_header_branch
    %16 = sbr.rel (%p14) target = $region8
  $region5: #{method_forward.1} parent=0 // loop_body
    %s18 = ssub.s32 %s13, 1
    %s19 = ssub.s32 %s13, 2
    %s26 = sadd.s32 1, %s21
    %p27 = scmp.ge.s32.totalorder %s26, 2
    %s28 = scalar_select %p27, 0, %s26
    %s29 = sadd.s32 1, %s20
    %s30 = scalar_select %p27, %s29, %s20
    %p31 = scmp.ge.s32.totalorder %s30, 1
    %s32 = scalar_select %p31, 0, %s30
    %s33 = ssub.s32 %s20, %s32
    %s34 = ssub.s32 %s21, %s28
    %s35 = sor.u32 %s33, %s34
    %p36 = scmp.eq.s32.totalorder %s35, 0
    %s38 = sadd.s32 %s37, 1
    %s39 = scalar_select %p36, %s37, %s38
    %p42 = pneg %p36
    %p43 = scmp.eq.s32.totalorder %s13, 1
    %p44 = por %p42, %p43
    %p45 = scmp.ne.s32.totalorder %s37, %s40
    %p46 = scmp.eq.s32.totalorder %s13, 0
    %p47 = por %p45, %p46
    %p48 = scmp.ne.s32.totalorder %s37, %s40
    %p49 = scmp.eq.s32.totalorder %s18, 1
    %p50 = por %p48, %p49
    %p51 = scmp.ne.s32.totalorder %s40, %s41
    %p52 = scmp.eq.s32.totalorder %s18, 0
    %p53 = por %p51, %p52
    %p54 = scmp.ne.s32.totalorder %s40, %s41
    %p55 = scmp.eq.s32.totalorder %s19, 1
    %p56 = por %p54, %p55
    %p58 = scmp.ne.s32.totalorder %s41, %s57
    %p59 = scmp.eq.s32.totalorder %s19, 0
    %p60 = por %p58, %p59
    %s61 = ssub.s32 %s21, %s28
    %p62 = scmp.eq.s32.totalorder %s61, 0
    %s64 = sadd.s32 %s63, 1
    %s65 = scalar_select %p62, %s63, %s64
    %p68 = pneg %p62
    %p69 = scmp.eq.s32.totalorder %s13, 1
    %p70 = por %p68, %p69
    %p71 = scmp.ne.s32.totalorder %s63, %s66
    %p72 = scmp.eq.s32.totalorder %s13, 0
    %p73 = por %p71, %p72
    %p74 = scmp.ne.s32.totalorder %s63, %s66
    %p75 = scmp.eq.s32.totalorder %s18, 1
    %p76 = por %p74, %p75
    %p77 = scmp.ne.s32.totalorder %s66, %s67
    %p78 = scmp.eq.s32.totalorder %s18, 0
    %p79 = por %p77, %p78
    %p80 = scmp.ne.s32.totalorder %s66, %s67
    %p81 = scmp.eq.s32.totalorder %s19, 1
    %p82 = por %p80, %p81
    %p84 = scmp.ne.s32.totalorder %s67, %s83
    %p85 = scmp.eq.s32.totalorder %s19, 0
    %p86 = por %p84, %p85
    %s88 = sadd.s32 %s87, 1
    %p91 = scmp.eq.s32.totalorder %s13, 1
    %p92 = scmp.ne.s32.totalorder %s87, %s89
    %p93 = scmp.eq.s32.totalorder %s13, 0
    %p94 = por %p92, %p93
    %p95 = scmp.ne.s32.totalorder %s87, %s89
    %p96 = scmp.eq.s32.totalorder %s18, 1
    %p97 = por %p95, %p96
    %p98 = scmp.ne.s32.totalorder %s89, %s90
    %p99 = scmp.eq.s32.totalorder %s18, 0
    %p100 = por %p98, %p99
    %p101 = scmp.ne.s32.totalorder %s89, %s90
    %p102 = scmp.eq.s32.totalorder %s19, 1
    %p103 = por %p101, %p102
    %p105 = scmp.ne.s32.totalorder %s90, %s104
    %p106 = scmp.eq.s32.totalorder %s19, 0
    %p107 = por %p105, %p106
    %s109 = sadd.s32 %s108, 1
    %p112 = scmp.eq.s32.totalorder %s13, 1
    %p113 = scmp.ne.s32.totalorder %s108, %s110
    %p114 = scmp.eq.s32.totalorder %s13, 0
    %p115 = por %p113, %p114
    %p116 = scmp.ne.s32.totalorder %s108, %s110
    %p117 = scmp.eq.s32.totalorder %s18, 1
    %p118 = por %p116, %p117
    %p119 = scmp.ne.s32.totalorder %s110, %s111
    %p120 = scmp.eq.s32.totalorder %s18, 0
    %p121 = por %p119, %p120
    %p122 = scmp.ne.s32.totalorder %s110, %s111
    %p123 = scmp.eq.s32.totalorder %s19, 1
    %p124 = por %p122, %p123
    %p126 = scmp.ne.s32.totalorder %s111, %s125
    %p127 = scmp.eq.s32.totalorder %s19, 0
    %p128 = por %p126, %p127
    %s130 = sadd.s32 %s129, 1
    %p133 = scmp.eq.s32.totalorder %s13, 1
    %p134 = scmp.ne.s32.totalorder %s129, %s131
    %p135 = scmp.eq.s32.totalorder %s13, 0
    %p136 = por %p134, %p135
    %p137 = scmp.ne.s32.totalorder %s129, %s131
    %p138 = scmp.eq.s32.totalorder %s18, 1
    %p139 = por %p137, %p138
    %p140 = scmp.ne.s32.totalorder %s131, %s132
    %p141 = scmp.eq.s32.totalorder %s18, 0
    %p142 = por %p140, %p141
    %p143 = scmp.ne.s32.totalorder %s131, %s132
    %p144 = scmp.eq.s32.totalorder %s19, 1
    %p145 = por %p143, %p144
    %p147 = scmp.ne.s32.totalorder %s132, %s146
    %p148 = scmp.eq.s32.totalorder %s19, 0
    %p149 = por %p147, %p148
    %s150 = ssub.s32 %s20, %s32
    %p151 = scmp.eq.s32.totalorder %s150, 0
    %s153 = sadd.s32 %s152, 1
    %s154 = scalar_select %p151, %s152, %s153
    %p157 = pneg %p151
    %p158 = scmp.eq.s32.totalorder %s13, 1
    %p159 = por %p157, %p158
    %p160 = scmp.ne.s32.totalorder %s152, %s155
    %p161 = scmp.eq.s32.totalorder %s13, 0
    %p162 = por %p160, %p161
    %p163 = scmp.ne.s32.totalorder %s152, %s155
    %p164 = scmp.eq.s32.totalorder %s18, 1
    %p165 = por %p163, %p164
    %p166 = scmp.ne.s32.totalorder %s155, %s156
    %p167 = scmp.eq.s32.totalorder %s18, 0
    %p168 = por %p166, %p167
    %p169 = scmp.ne.s32.totalorder %s155, %s156
    %p170 = scmp.eq.s32.totalorder %s19, 1
    %p171 = por %p169, %p170
    %p173 = scmp.ne.s32.totalorder %s156, %s172
    %p174 = scmp.eq.s32.totalorder %s19, 0
    %p175 = por %p173, %p174
    %s176 = ssub.s32 %s20, %s32
    %p177 = scmp.eq.s32.totalorder %s176, 0
    %s179 = sadd.s32 %s178, 1
    %s180 = scalar_select %p177, %s178, %s179
    %p183 = pneg %p177
    %p184 = scmp.eq.s32.totalorder %s13, 1
    %p185 = por %p183, %p184
    %p186 = scmp.ne.s32.totalorder %s178, %s181
    %p187 = scmp.eq.s32.totalorder %s13, 0
    %p188 = por %p186, %p187
    %p189 = scmp.ne.s32.totalorder %s178, %s181
    %p190 = scmp.eq.s32.totalorder %s18, 1
    %p191 = por %p189, %p190
    %p192 = scmp.ne.s32.totalorder %s181, %s182
    %p193 = scmp.eq.s32.totalorder %s18, 0
    %p194 = por %p192, %p193
    %p195 = scmp.ne.s32.totalorder %s181, %s182
    %p196 = scmp.eq.s32.totalorder %s19, 1
    %p197 = por %p195, %p196
    %p199 = scmp.ne.s32.totalorder %s182, %s198
    %p200 = scmp.eq.s32.totalorder %s19, 0
    %p201 = por %p199, %p200
    %p202 = scmp.le.s32.totalorder 1, %s13
    %p203 = scmp.lt.s32.totalorder %s13, 3
    %p204 = pnand %p202, %p203
    %p205 = pneg %p204
    // Predicated region
    $region9: #{method_forward.1} parent=5 // pred_check
      _
    $region10: #{method_forward.1} parent=5 // pred_check_branch
      %207 = sbr.rel (%p204) target = $region12
    $region11: #{method_forward.1} parent=5 // pred_region
      %s208 = ssub.s32 %s13, 1
      // Predicated region
      $region13: #{method_forward.1} parent=11 // pred_check
        %p209 = pneg %p100
      $region14: #{method_forward.1} parent=11 // pred_check_branch
        %211 = sbr.rel (%p209) target = $region16
      $region15: #{method_forward.1} parent=11 // pred_region
        _
      $region16: #{method_forward.1} parent=11 // pred_fallthru
        _
      // Predicated region
      $region17: #{method_forward.1} parent=11 // pred_check
        %p212 = pneg %p121
      $region18: #{method_forward.1} parent=11 // pred_check_branch
        %214 = sbr.rel (%p212) target = $region20
      $region19: #{method_forward.1} parent=11 // pred_region
        _
      $region20: #{method_forward.1} parent=11 // pred_fallthru
        _
      // Predicated region
      $region21: #{method_forward.1} parent=11 // pred_check
        %p215 = pneg %p142
      $region22: #{method_forward.1} parent=11 // pred_check_branch
        %217 = sbr.rel (%p215) target = $region24
      $region23: #{method_forward.1} parent=11 // pred_region
        _
      $region24: #{method_forward.1} parent=11 // pred_fallthru
        _
    $region12: #{method_forward.1} parent=5 // pred_fallthru
      _
    %p218 = scmp.lt.s32.totalorder %s13, 2
    // Predicated region
    $region25: #{method_forward.1} parent=5 // pred_check
      %p219 = pneg %p218
    $region26: #{method_forward.1} parent=5 // pred_check_branch
      %221 = sbr.rel (%p219) target = $region28
    $region27: #{method_forward.1} parent=5 // pred_region
      // Predicated region
      $region29: #{method_forward.1} parent=27 // pred_check
        %p222 = pneg %p47
      $region30: #{method_forward.1} parent=27 // pred_check_branch
        %224 = sbr.rel (%p222) target = $region32
      $region31: #{method_forward.1} parent=27 // pred_region
        %s225 = smul.u32 4, %s21
        %p226 = scmp.lt.s32.totalorder %s20, 0
        %s227 = scalar_select %p226, %s20, 0
        %p228 = scmp.lt.s32.totalorder %s225, 7
        %s229 = scalar_select %p228, %s225, 7
        %s230 = smul.addr %s227, 8
        %s231 = sadd.s32 %s229, %s230
        %s232 = smul.addr %s231, 4
        %s233 = scalar_lea.vmem %s0, %s232
        %s234 = smul.u32 4, %s21
      $region32: #{method_forward.1} parent=27 // pred_fallthru
        _
      // Predicated region
      $region33: #{method_forward.1} parent=27 // pred_check
        %p235 = pneg %p73
      $region34: #{method_forward.1} parent=27 // pred_check_branch
        %237 = sbr.rel (%p235) target = $region36
      $region35: #{method_forward.1} parent=27 // pred_region
        %s238 = smul.u32 64, %s21
        %p239 = scmp.lt.s32.totalorder %s238, 127
        %s240 = scalar_select %p239, %s238, 127
        %s241 = smul.addr %s240, 4
        %s242 = scalar_lea.vmem %s1, %s241
        %s243 = smul.u32 64, %s21
      $region36: #{method_forward.1} parent=27 // pred_fallthru
        _
    $region28: #{method_forward.1} parent=5 // pred_fallthru
      _
    %p244 = scmp.le.s32.totalorder 1, %s13
    %p245 = scmp.lt.s32.totalorder %s13, 3
    %p246 = pnand %p244, %p245
    %p247 = pneg %p246
    // Predicated region
    $region37: #{method_forward.1} parent=5 // pred_check
      _
    $region38: #{method_forward.1} parent=5 // pred_check_branch
      %249 = sbr.rel (%p246) target = $region40
    $region39: #{method_forward.1} parent=5 // pred_region
      %s250 = ssub.s32 %s13, 1
      %s251 = smul.u32 4, %s23
      %p252 = scmp.lt.s32.totalorder %s22, 0
      %s253 = scalar_select %p252, %s22, 0
      %p254 = scmp.lt.s32.totalorder %s251, 7
      %s255 = scalar_select %p254, %s251, 7
      %s256 = smul.addr %s253, 8
      %s257 = sadd.s32 %s255, %s256
      %s258 = smul.addr %s257, 4
      %s259 = scalar_lea.vmem %s0, %s258
      %p260 = pneg %p53
      %p261 = pneg %p50
      %s262 = smul.u32 64, %s23
      %p263 = scmp.lt.s32.totalorder %s262, 127
      %s264 = scalar_select %p263, %s262, 127
      %s265 = smul.addr %s264, 4
      %s266 = scalar_lea.vmem %s1, %s265
      %p267 = pneg %p79
      %p268 = pneg %p76
      %p269 = pneg %p100
      %p270 = pneg %p97
      %p271 = pneg %p121
      %p272 = pneg %p118
      %p273 = pneg %p142
      %p274 = pneg %p139
      %p275 = pneg %p168
      %p276 = pneg %p165
      %p277 = scmp.lt.s32.totalorder %s22, 0
      %s278 = scalar_select %p277, %s22, 0
      %s279 = smul.addr %s278, 8
      %s280 = scalar_lea.vmem %s5, %s279
      %p281 = pneg %p194
      %p282 = pneg %p191
      %p283 = scmp.lt.s32.totalorder %s22, 0
      %s284 = scalar_select %p283, %s22, 0
      %s285 = smul.addr %s284, 8
      %s286 = scalar_lea.vmem %s6, %s285
      %s287 = smul.u32 4, %s23
      %p288 = scmp.lt.s32.totalorder %s22, 0
      %s289 = scalar_select %p288, %s22, 0
      %p290 = scmp.lt.s32.totalorder %s287, 7
      %s291 = scalar_select %p290, %s287, 7
      %s292 = smul.addr %s289, 8
      %s293 = sadd.s32 %s291, %s292
      %s294 = smul.addr %s293, 4
      %s295 = scalar_lea.vmem %s0, %s294
      %s296 = smul.u32 4, %s23
      %s297 = smul.u32 64, %s23
      %p298 = scmp.lt.s32.totalorder %s297, 127
      %s299 = scalar_select %p298, %s297, 127
      %s300 = smul.addr %s299, 4
      %s301 = scalar_lea.vmem %s1, %s300
      %s302 = smul.u32 64, %s23
      %p303 = scmp.lt.s32.totalorder %s22, 0
      %s304 = scalar_select %p303, %s22, 0
      %s305 = smul.addr %s304, 8
      %s306 = scalar_lea.vmem %s5, %s305
      %p307 = scmp.lt.s32.totalorder %s22, 0
      %s308 = scalar_select %p307, %s22, 0
      %s309 = smul.addr %s308, 8
      %s310 = scalar_lea.vmem %s6, %s309
      %p312 = scmp.eq.s32.totalorder %s23, 0
      // Predicated region
      $region41: #{method_forward.1} parent=39 // pred_check
        %p313 = pneg %p312
      $region42: #{method_forward.1} parent=39 // pred_check_branch
        %315 = sbr.rel (%p313) target = $region44
      $region43: #{method_forward.1} parent=39 // pred_region
        %316 = vst [vmem:[#allocation2] sm:$0xff] 0.0
      $region44: #{method_forward.1} parent=39 // pred_fallthru
        _
      %v317 = vld [vmem:[#allocation2] sm:$0xff]
      %v318 = vld [vmem:[%s295] sm:$0xff]
      %v319 = vld [vmem:[%s295 + $0x8] sm:$0xff]
      %v320 = vld [vmem:[%s301] sm:$0xf]
      %v321 = vld [vmem:[%s301 + $0x4] sm:$0xf]
      %v322 = vld [vmem:[%s301 + $0x8] sm:$0xf]
      %v323 = vld [vmem:[%s301 + $0xc] sm:$0xf]
      %v324 = vld [vmem:[%s301 + $0x10] sm:$0xf]
      %v325 = vld [vmem:[%s301 + $0x14] sm:$0xf]
      %v326 = vld [vmem:[%s301 + $0x18] sm:$0xf]
      %v327 = vld [vmem:[%s301 + $0x1c] sm:$0xf]
      %v328 = vld [vmem:[%s301 + $0x20] sm:$0xf]
      %v329 = vld [vmem:[%s301 + $0x24] sm:$0xf]
      %v330 = vld [vmem:[%s301 + $0x28] sm:$0xf]
      %v331 = vld [vmem:[%s301 + $0x2c] sm:$0xf]
      %v332 = vld [vmem:[%s301 + $0x30] sm:$0xf]
      %v333 = vld [vmem:[%s301 + $0x34] sm:$0xf]
      %v334 = vld [vmem:[%s301 + $0x38] sm:$0xf]
      %v335 = vld [vmem:[%s301 + $0x3c] sm:$0xf]
      %v336 = vld [vmem:[%s301 + $0x40] sm:$0xf]
      %v337 = vld [vmem:[%s301 + $0x44] sm:$0xf]
      %v338 = vld [vmem:[%s301 + $0x48] sm:$0xf]
      %v339 = vld [vmem:[%s301 + $0x4c] sm:$0xf]
      %v340 = vld [vmem:[%s301 + $0x50] sm:$0xf]
      %v341 = vld [vmem:[%s301 + $0x54] sm:$0xf]
      %v342 = vld [vmem:[%s301 + $0x58] sm:$0xf]
      %v343 = vld [vmem:[%s301 + $0x5c] sm:$0xf]
      %v344 = vld [vmem:[%s301 + $0x60] sm:$0xf]
      %v345 = vld [vmem:[%s301 + $0x64] sm:$0xf]
      %v346 = vld [vmem:[%s301 + $0x68] sm:$0xf]
      %v347 = vld [vmem:[%s301 + $0x6c] sm:$0xf]
      %v348 = vld [vmem:[%s301 + $0x70] sm:$0xf]
      %v349 = vld [vmem:[%s301 + $0x74] sm:$0xf]
      %v350 = vld [vmem:[%s301 + $0x78] sm:$0xf]
      %v351 = vld [vmem:[%s301 + $0x7c] sm:$0xf]
      %v352 = vld [vmem:[%s301 + $0x80] sm:$0xf]
      %v353 = vld [vmem:[%s301 + $0x84] sm:$0xf]
      %v354 = vld [vmem:[%s301 + $0x88] sm:$0xf]
      %v355 = vld [vmem:[%s301 + $0x8c] sm:$0xf]
      %v356 = vld [vmem:[%s301 + $0x90] sm:$0xf]
      %v357 = vld [vmem:[%s301 + $0x94] sm:$0xf]
      %v358 = vld [vmem:[%s301 + $0x98] sm:$0xf]
      %v359 = vld [vmem:[%s301 + $0x9c] sm:$0xf]
      %v360 = vld [vmem:[%s301 + $0xa0] sm:$0xf]
      %v361 = vld [vmem:[%s301 + $0xa4] sm:$0xf]
      %v362 = vld [vmem:[%s301 + $0xa8] sm:$0xf]
      %v363 = vld [vmem:[%s301 + $0xac] sm:$0xf]
      %v364 = vld [vmem:[%s301 + $0xb0] sm:$0xf]
      %v365 = vld [vmem:[%s301 + $0xb4] sm:$0xf]
      %v366 = vld [vmem:[%s301 + $0xb8] sm:$0xf]
      %v367 = vld [vmem:[%s301 + $0xbc] sm:$0xf]
      %v368 = vld [vmem:[%s301 + $0xc0] sm:$0xf]
      %v369 = vld [vmem:[%s301 + $0xc4] sm:$0xf]
      %v370 = vld [vmem:[%s301 + $0xc8] sm:$0xf]
      %v371 = vld [vmem:[%s301 + $0xcc] sm:$0xf]
      %v372 = vld [vmem:[%s301 + $0xd0] sm:$0xf]
      %v373 = vld [vmem:[%s301 + $0xd4] sm:$0xf]
      %v374 = vld [vmem:[%s301 + $0xd8] sm:$0xf]
      %v375 = vld [vmem:[%s301 + $0xdc] sm:$0xf]
      %v376 = vld [vmem:[%s301 + $0xe0] sm:$0xf]
      %v377 = vld [vmem:[%s301 + $0xe4] sm:$0xf]
      %v378 = vld [vmem:[%s301 + $0xe8] sm:$0xf]
      %v379 = vld [vmem:[%s301 + $0xec] sm:$0xf]
      %v380 = vld [vmem:[%s301 + $0xf0] sm:$0xf]
      %v381 = vld [vmem:[%s301 + $0xf4] sm:$0xf]
      %v382 = vld [vmem:[%s301 + $0xf8] sm:$0xf]
      %v383 = vld [vmem:[%s301 + $0xfc] sm:$0xf]
      %v386 = vunpack.c.l.b16 %v318
      %v387 = vunpack.c.h.b16 %v318
      %v388 = vunpack.c.l.b16 %v319
      %v389 = vunpack.c.h.b16 %v319
      %v390 = vpack.c.b16 %v386, %v386
      %v391 = vpack.c.b16 %v387, %v387
      %v392 = vpack.c.b16 %v388, %v388
      %v393 = vpack.c.b16 %v389, %v389
      %v462 = vunpack.c.l.b16 %v320
      %v463 = vunpack.c.l.b16 %v321
      %v464 = vunpack.c.l.b16 %v322
      %v465 = vunpack.c.l.b16 %v323
      %v466 = vunpack.c.l.b16 %v324
      %v467 = vunpack.c.l.b16 %v325
      %v468 = vunpack.c.l.b16 %v326
      %v469 = vunpack.c.l.b16 %v327
      %v470 = vunpack.c.l.b16 %v328
      %v471 = vunpack.c.l.b16 %v329
      %v472 = vunpack.c.l.b16 %v330
      %v473 = vunpack.c.l.b16 %v331
      %v474 = vunpack.c.l.b16 %v332
      %v475 = vunpack.c.l.b16 %v333
      %v476 = vunpack.c.l.b16 %v334
      %v477 = vunpack.c.l.b16 %v335
      %v478 = vunpack.c.l.b16 %v336
      %v479 = vunpack.c.l.b16 %v337
      %v480 = vunpack.c.l.b16 %v338
      %v481 = vunpack.c.l.b16 %v339
      %v482 = vunpack.c.l.b16 %v340
      %v483 = vunpack.c.l.b16 %v341
      %v484 = vunpack.c.l.b16 %v342
      %v485 = vunpack.c.l.b16 %v343
      %v486 = vunpack.c.l.b16 %v344
      %v487 = vunpack.c.l.b16 %v345
      %v488 = vunpack.c.l.b16 %v346
      %v489 = vunpack.c.l.b16 %v347
      %v490 = vunpack.c.l.b16 %v348
      %v491 = vunpack.c.l.b16 %v349
      %v492 = vunpack.c.l.b16 %v350
      %v493 = vunpack.c.l.b16 %v351
      %v494 = vunpack.c.l.b16 %v352
      %v495 = vunpack.c.l.b16 %v353
      %v496 = vunpack.c.l.b16 %v354
      %v497 = vunpack.c.l.b16 %v355
      %v498 = vunpack.c.l.b16 %v356
      %v499 = vunpack.c.l.b16 %v357
      %v500 = vunpack.c.l.b16 %v358
      %v501 = vunpack.c.l.b16 %v359
      %v502 = vunpack.c.l.b16 %v360
      %v503 = vunpack.c.l.b16 %v361
      %v504 = vunpack.c.l.b16 %v362
      %v505 = vunpack.c.l.b16 %v363
      %v506 = vunpack.c.l.b16 %v364
      %v507 = vunpack.c.l.b16 %v365
      %v508 = vunpack.c.l.b16 %v366
      %v509 = vunpack.c.l.b16 %v367
      %v510 = vunpack.c.l.b16 %v368
      %v511 = vunpack.c.l.b16 %v369
      %v512 = vunpack.c.l.b16 %v370
      %v513 = vunpack.c.l.b16 %v371
      %v514 = vunpack.c.l.b16 %v372
      %v515 = vunpack.c.l.b16 %v373
      %v516 = vunpack.c.l.b16 %v374
      %v517 = vunpack.c.l.b16 %v375
      %v518 = vunpack.c.l.b16 %v376
      %v519 = vunpack.c.l.b16 %v377
      %v520 = vunpack.c.l.b16 %v378
      %v521 = vunpack.c.l.b16 %v379
      %v522 = vunpack.c.l.b16 %v380
      %v523 = vunpack.c.l.b16 %v381
      %v524 = vunpack.c.l.b16 %v382
      %v525 = vunpack.c.l.b16 %v383
      %v526 = vpack.c.b16 %v463, %v462
      %v527 = vpack.c.b16 %v465, %v464
      %v528 = vpack.c.b16 %v467, %v466
      %v529 = vpack.c.b16 %v469, %v468
      %v530 = vpack.c.b16 %v471, %v470
      %v531 = vpack.c.b16 %v473, %v472
      %v532 = vpack.c.b16 %v475, %v474
      %v533 = vpack.c.b16 %v477, %v476
      %v534 = vpack.c.b16 %v479, %v478
      %v535 = vpack.c.b16 %v481, %v480
      %v536 = vpack.c.b16 %v483, %v482
      %v537 = vpack.c.b16 %v485, %v484
      %v538 = vpack.c.b16 %v487, %v486
      %v539 = vpack.c.b16 %v489, %v488
      %v540 = vpack.c.b16 %v491, %v490
      %v541 = vpack.c.b16 %v493, %v492
      %v542 = vpack.c.b16 %v495, %v494
      %v543 = vpack.c.b16 %v497, %v496
      %v544 = vpack.c.b16 %v499, %v498
      %v545 = vpack.c.b16 %v501, %v500
      %v546 = vpack.c.b16 %v503, %v502
      %v547 = vpack.c.b16 %v505, %v504
      %v548 = vpack.c.b16 %v507, %v506
      %v549 = vpack.c.b16 %v509, %v508
      %v550 = vpack.c.b16 %v511, %v510
      %v551 = vpack.c.b16 %v513, %v512
      %v552 = vpack.c.b16 %v515, %v514
      %v553 = vpack.c.b16 %v517, %v516
      %v554 = vpack.c.b16 %v519, %v518
      %v555 = vpack.c.b16 %v521, %v520
      %v556 = vpack.c.b16 %v523, %v522
      %v557 = vpack.c.b16 %v525, %v524
      %590 = vmatprep.subr.bf16.mxu0 0
      %591 = vmatpush1.bf16.msra.mxu0 %v526
      %592 = vmatprep.subr.bf16.mxu0 0
      %593 = vmatpush1.bf16.msra.mxu0 %v527
      %594 = vmatprep.subr.bf16.mxu0 0
      %595 = vmatpush1.bf16.msra.mxu0 %v528
      %596 = vmatprep.subr.bf16.mxu0 0
      %597 = vmatpush1.bf16.msra.mxu0 %v529
      %598 = vmatprep.subr.bf16.mxu0 0
      %599 = vmatpush1.bf16.msra.mxu0 %v530
      %600 = vmatprep.subr.bf16.mxu0 0
      %601 = vmatpush1.bf16.msra.mxu0 %v531
      %602 = vmatprep.subr.bf16.mxu0 0
      %603 = vmatpush1.bf16.msra.mxu0 %v532
      %604 = vmatprep.subr.bf16.mxu0 0
      %605 = vmatpush1.bf16.msra.mxu0 %v533
      %606 = vmatprep.subr.bf16.mxu0 0
      %607 = vmatpush1.bf16.msra.mxu0 %v534
      %608 = vmatprep.subr.bf16.mxu0 0
      %609 = vmatpush1.bf16.msra.mxu0 %v535
      %610 = vmatprep.subr.bf16.mxu0 0
      %611 = vmatpush1.bf16.msra.mxu0 %v536
      %612 = vmatprep.subr.bf16.mxu0 0
      %613 = vmatpush1.bf16.msra.mxu0 %v537
      %614 = vmatprep.subr.bf16.mxu0 0
      %615 = vmatpush1.bf16.msra.mxu0 %v538
      %616 = vmatprep.subr.bf16.mxu0 0
      %617 = vmatpush1.bf16.msra.mxu0 %v539
      %618 = vmatprep.subr.bf16.mxu0 0
      %619 = vmatpush1.bf16.msra.mxu0 %v540
      %620 = vmatprep.subr.bf16.mxu0 0
      %621 = vmatpush1.bf16.msra.mxu0 %v541
      %622 = vmatprep.mubr.bf16.mxu0 %v391
      %623 = vmatmul.mubr.bf16.gmra.mrb[0].mxu0 %v390
      %v624 = vpop.f32.mrb[0].mxu0
      %v625 = vadd.f32 0.0, %v624
      %v626 = vpop.f32.mrb[0].mxu0
      %v627 = vpop.f32.mrb[0].mxu0
      %v628 = vpop.f32.mrb[0].mxu0
      %629 = vdwg.mxu0
      %630 = vmatprep.subr.bf16.mxu0 0
      %631 = vmatpush1.bf16.msra.mxu0 %v542
      %632 = vmatprep.subr.bf16.mxu0 0
      %633 = vmatpush1.bf16.msra.mxu0 %v543
      %634 = vmatprep.subr.bf16.mxu0 0
      %635 = vmatpush1.bf16.msra.mxu0 %v544
      %636 = vmatprep.subr.bf16.mxu0 0
      %637 = vmatpush1.bf16.msra.mxu0 %v545
      %638 = vmatprep.subr.bf16.mxu0 0
      %639 = vmatpush1.bf16.msra.mxu0 %v546
      %640 = vmatprep.subr.bf16.mxu0 0
      %641 = vmatpush1.bf16.msra.mxu0 %v547
      %642 = vmatprep.subr.bf16.mxu0 0
      %643 = vmatpush1.bf16.msra.mxu0 %v548
      %644 = vmatprep.subr.bf16.mxu0 0
      %645 = vmatpush1.bf16.msra.mxu0 %v549
      %646 = vmatprep.subr.bf16.mxu0 0
      %647 = vmatpush1.bf16.msra.mxu0 %v550
      %648 = vmatprep.subr.bf16.mxu0 0
      %649 = vmatpush1.bf16.msra.mxu0 %v551
      %650 = vmatprep.subr.bf16.mxu0 0
      %651 = vmatpush1.bf16.msra.mxu0 %v552
      %652 = vmatprep.subr.bf16.mxu0 0
      %653 = vmatpush1.bf16.msra.mxu0 %v553
      %654 = vmatprep.subr.bf16.mxu0 0
      %655 = vmatpush1.bf16.msra.mxu0 %v554
      %656 = vmatprep.subr.bf16.mxu0 0
      %657 = vmatpush1.bf16.msra.mxu0 %v555
      %658 = vmatprep.subr.bf16.mxu0 0
      %659 = vmatpush1.bf16.msra.mxu0 %v556
      %660 = vmatprep.subr.bf16.mxu0 0
      %661 = vmatpush1.bf16.msra.mxu0 %v557
      %662 = vmatprep.mubr.bf16.mxu0 %v393
      %663 = vmatmul.mubr.bf16.gmra.mrb[0].mxu0 %v392
      %v664 = vpop.f32.mrb[0].mxu0
      %v665 = vadd.f32 %v625, %v664
      %v666 = vpop.f32.mrb[0].mxu0
      %v667 = vpop.f32.mrb[0].mxu0
      %v668 = vpop.f32.mrb[0].mxu0
      %669 = vdwg.mxu0
      %v670 = vadd.f32 %v317, %v665
      %671 = vst [vmem:[#allocation2] sm:$0xff] %v670
      %p672 = scmp.eq.s32.totalorder %s23, 1
      // Predicated region
      $region45: #{method_forward.1} parent=39 // pred_check
        %p673 = pneg %p672
      $region46: #{method_forward.1} parent=39 // pred_check_branch
        %675 = sbr.rel (%p673) target = $region48
      $region47: #{method_forward.1} parent=39 // pred_region
        %v676 = vld [vmem:[#allocation2] sm:$0xff]
        %v677 = vld [vmem:[%s2] sm:$0x1]
        %v679 = vlaneseq
        %v680 = vshrl.u32 %v679, 7
        %v681 = vsub.s32 0, %v680
        %v682 = vrot.slane %v677, %v681
        %v684 = vadd.f32 %v676, %v682
        %v685 = vmax.f32 %v684, 0.0
        %v686 = vpack.c.bf16 %v685, %v685
        %v687 = vld [vmem:[%s3] sm:$0xf]
        %v688 = vld [vmem:[%s3 + $0x4] sm:$0xf]
        %v689 = vld [vmem:[%s3 + $0x8] sm:$0xf]
        %v690 = vld [vmem:[%s3 + $0xc] sm:$0xf]
        %v691 = vld [vmem:[%s3 + $0x10] sm:$0xf]
        %v692 = vld [vmem:[%s3 + $0x14] sm:$0xf]
        %v693 = vld [vmem:[%s3 + $0x18] sm:$0xf]
        %v694 = vld [vmem:[%s3 + $0x1c] sm:$0xf]
        %v695 = vld [vmem:[%s3 + $0x20] sm:$0xf]
        %v696 = vld [vmem:[%s3 + $0x24] sm:$0xf]
        %v697 = vld [vmem:[%s3 + $0x28] sm:$0xf]
        %v698 = vld [vmem:[%s3 + $0x2c] sm:$0xf]
        %v699 = vld [vmem:[%s3 + $0x30] sm:$0xf]
        %v700 = vld [vmem:[%s3 + $0x34] sm:$0xf]
        %v701 = vld [vmem:[%s3 + $0x38] sm:$0xf]
        %v702 = vld [vmem:[%s3 + $0x3c] sm:$0xf]
        %v703 = vld [vmem:[%s4] sm:$0x1]
        %v705 = vlaneseq
        %v706 = vshrl.u32 %v705, 7
        %v707 = vsub.s32 0, %v706
        %v708 = vrot.slane %v703, %v707
        %v726 = vunpack.c.l.b16 %v687
        %v727 = vunpack.c.l.b16 %v688
        %v728 = vunpack.c.l.b16 %v689
        %v729 = vunpack.c.l.b16 %v690
        %v730 = vunpack.c.l.b16 %v691
        %v731 = vunpack.c.l.b16 %v692
        %v732 = vunpack.c.l.b16 %v693
        %v733 = vunpack.c.l.b16 %v694
        %v734 = vunpack.c.l.b16 %v695
        %v735 = vunpack.c.l.b16 %v696
        %v736 = vunpack.c.l.b16 %v697
        %v737 = vunpack.c.l.b16 %v698
        %v738 = vunpack.c.l.b16 %v699
        %v739 = vunpack.c.l.b16 %v700
        %v740 = vunpack.c.l.b16 %v701
        %v741 = vunpack.c.l.b16 %v702
        %v742 = vpack.c.b16 %v727, %v726
        %v743 = vpack.c.b16 %v729, %v728
        %v744 = vpack.c.b16 %v731, %v730
        %v745 = vpack.c.b16 %v733, %v732
        %v746 = vpack.c.b16 %v735, %v734
        %v747 = vpack.c.b16 %v737, %v736
        %v748 = vpack.c.b16 %v739, %v738
        %v749 = vpack.c.b16 %v741, %v740
        %758 = vmatprep.subr.bf16.mxu0 0
        %759 = vmatpush1.bf16.msra.mxu0 %v742
        %760 = vmatprep.subr.bf16.mxu0 0
        %761 = vmatpush1.bf16.msra.mxu0 %v743
        %762 = vmatprep.subr.bf16.mxu0 0
        %763 = vmatpush1.bf16.msra.mxu0 %v744
        %764 = vmatprep.subr.bf16.mxu0 0
        %765 = vmatpush1.bf16.msra.mxu0 %v745
        %766 = vmatprep.subr.bf16.mxu0 0
        %767 = vmatpush1.bf16.msra.mxu0 %v746
        %768 = vmatprep.subr.bf16.mxu0 0
        %769 = vmatpush1.bf16.msra.mxu0 %v747
        %770 = vmatprep.subr.bf16.mxu0 0
        %771 = vmatpush1.bf16.msra.mxu0 %v748
        %772 = vmatprep.subr.bf16.mxu0 0
        %773 = vmatpush1.bf16.msra.mxu0 %v749
        %774 = vmatprep.subr.bf16.mxu0 0
        %775 = vmatpush1.bf16.msra.mxu0 0
        %776 = vmatprep.subr.bf16.mxu0 0
        %777 = vmatpush1.bf16.msra.mxu0 0
        %778 = vmatprep.subr.bf16.mxu0 0
        %779 = vmatpush1.bf16.msra.mxu0 0
        %780 = vmatprep.subr.bf16.mxu0 0
        %781 = vmatpush1.bf16.msra.mxu0 0
        %782 = vmatprep.subr.bf16.mxu0 0
        %783 = vmatpush1.bf16.msra.mxu0 0
        %784 = vmatprep.subr.bf16.mxu0 0
        %785 = vmatpush1.bf16.msra.mxu0 0
        %786 = vmatprep.subr.bf16.mxu0 0
        %787 = vmatpush1.bf16.msra.mxu0 0
        %788 = vmatprep.subr.bf16.mxu0 0
        %789 = vmatpush1.bf16.msra.mxu0 0
        %790 = vmatprep.mubr.bf16.mxu0 0
        %791 = vmatmul.mubr.bf16.gmra.mrb[0].mxu0 %v686
        %v792 = vpop.f32.mrb[0].mxu0
        %v793 = vadd.f32 %v708, %v792
        %v794 = vpop.f32.mrb[0].mxu0
        %v795 = vpop.f32.mrb[0].mxu0
        %v796 = vpop.f32.mrb[0].mxu0
        %797 = vdwg.mxu0
        %798 = vst [vmem:[%s306] sm:$0xff] %v793
        %799 = vmax.xlane.f32.xlu0 %v793
        %v800 = vpop.xlane.xlu0 %799
        %v801 = vlaneseq
        %v802 = vand.u32 %v801, 127
        %vm803 = vcmp.eq.f32.partialorder %v793, %v800
        %v804 = vsel %vm803, %v802, 128
        %v805 = vand.u32 %v804, 65535
        %v806 = vshra.s32 %v804, 16
        %v807 = vcvt.s32.f32 %v805
        %v808 = vcvt.s32.f32 %v806
        %809 = vmin.xlane.f32.xlu0 %v808
        %v810 = vpop.xlane.xlu0 %809
        %vm811 = vcmp.eq.f32.partialorder %v808, %v810
        %v812 = vsel %vm811, %v807, inf
        %813 = vmin.xlane.f32.xlu0 %v812
        %v814 = vpop.xlane.xlu0 %813
        %v815 = vcvt.f32.s32 %v814
        %v816 = vcvt.f32.s32 %v810
        %v817 = vshll.u32 %v816, 16
        %v818 = vadd.s32 %v817, %v815
        %819 = vst [vmem:[%s310] sm:$0xff] %v818
      $region48: #{method_forward.1} parent=39 // pred_fallthru
        _
      %p820 = scmp.lt.s32.totalorder %s22, 0
      %s821 = scalar_select %p820, %s22, 0
      %s822 = smul.addr %s821, 8
      %s823 = scalar_lea.vmem %s5, %s822
      %p824 = scmp.lt.s32.totalorder %s22, 0
      %s825 = scalar_select %p824, %s22, 0
      %s826 = smul.addr %s825, 8
      %s827 = scalar_lea.vmem %s6, %s826
      // Predicated region
      $region49: #{method_forward.1} parent=39 // pred_check
        %p828 = pneg %p165
      $region50: #{method_forward.1} parent=39 // pred_check_branch
        %830 = sbr.rel (%p828) target = $region52
      $region51: #{method_forward.1} parent=39 // pred_region
        _
      $region52: #{method_forward.1} parent=39 // pred_fallthru
        _
      // Predicated region
      $region53: #{method_forward.1} parent=39 // pred_check
        %p831 = pneg %p191
      $region54: #{method_forward.1} parent=39 // pred_check_branch
        %833 = sbr.rel (%p831) target = $region56
      $region55: #{method_forward.1} parent=39 // pred_region
        _
      $region56: #{method_forward.1} parent=39 // pred_fallthru
        _
      // Predicated region
      $region57: #{method_forward.1} parent=39 // pred_check
        %p834 = pneg %p165
      $region58: #{method_forward.1} parent=39 // pred_check_branch
        %836 = sbr.rel (%p834) target = $region60
      $region59: #{method_forward.1} parent=39 // pred_region
        %p837 = scmp.lt.s32.totalorder %s22, 0
        %s838 = scalar_select %p837, %s22, 0
        %s839 = smul.addr %s838, 8
        %s840 = scalar_lea.vmem %s5, %s839
      $region60: #{method_forward.1} parent=39 // pred_fallthru
        _
      // Predicated region
      $region61: #{method_forward.1} parent=39 // pred_check
        %p841 = pneg %p191
      $region62: #{method_forward.1} parent=39 // pred_check_branch
        %843 = sbr.rel (%p841) target = $region64
      $region63: #{method_forward.1} parent=39 // pred_region
        %p844 = scmp.lt.s32.totalorder %s22, 0
        %s845 = scalar_select %p844, %s22, 0
        %s846 = smul.addr %s845, 8
        %s847 = scalar_lea.vmem %s6, %s846
      $region64: #{method_forward.1} parent=39 // pred_fallthru
        _
    $region40: #{method_forward.1} parent=5 // pred_fallthru
      _
    %p848 = scmp.le.s32.totalorder 2, %s13
    // Predicated region
    $region65: #{method_forward.1} parent=5 // pred_check
      %p849 = pneg %p848
    $region66: #{method_forward.1} parent=5 // pred_check_branch
      %851 = sbr.rel (%p849) target = $region68
    $region67: #{method_forward.1} parent=5 // pred_region
      %s852 = ssub.s32 %s13, 2
    $region68: #{method_forward.1} parent=5 // pred_fallthru
      _
  $region6: #{method_forward.1} parent=0 // loop_footer
    %s17 = sadd.s32 1, %s13
  $region7: #{method_forward.1} parent=0 // loop_footer_branch
    %12 = sbr.rel target = $region3
  $region8: #{method_forward.1} parent=0 // loop_exit
    _

</llo_original>
